<compile_context>
chip_gen: v7x
topology: tpu7x:2x2x1
jax: 0.10.0
libtpu: 0.0.40
codegen_flags: <defaults>
</compile_context>

<pallas_src>
import functools

import jax
import jax.numpy as jnp
from jax.experimental import pallas as pl
from jax.experimental.pallas import tpu as pltpu


def _rmsnorm_kernel(x_ref, w_ref, o_ref, *, eps: float):
    # x_ref: (tile_rows, D) in input dtype; w_ref: (1, D); o_ref: (tile_rows, D)
    x = x_ref[...].astype(jnp.float32)                        # x.float()
    # Block last dim == full hidden dim -> true mean over D (no padded lanes).
    ms = jnp.mean(x * x, axis=-1, keepdims=True)
    y = (x * jax.lax.rsqrt(ms + eps)).astype(x_ref.dtype)     # _norm(x).type_as(x)
    # PyTorch promotion for `output * self.weight`.
    o_ref[...] = y.astype(o_ref.dtype) * w_ref[...].astype(o_ref.dtype)


def _sublane_packing(dtype) -> int:
    # rows per packed vreg: f32 -> 8, bf16/f16 -> 16, int8/fp8 -> 32
    return 8 * max(1, 4 // jnp.dtype(dtype).itemsize)


def _round_up(a: int, b: int) -> int:
    return ((a + b - 1) // b) * b


def _is_multi_tc_chip() -> bool:
    # Best-effort: only v7x exposes 2 TensorCores per chip. Default False so
    # single-TC chips (v5e/v6e) never pay for tile shrinking.
    try:
        kind = jax.devices()[0].device_kind.lower()
    except Exception:
        return False
    return "v7" in kind


_TILE_BYTES_TARGET = 2 * 1024 * 1024  # ~2 MiB input tile ~= HBM roofline knee


def rmsnorm(x: jax.Array, weight: jax.Array, eps: float = 1e-5,
            tile_rows: int | None = None) -> jax.Array:
    """RMSNorm over the last axis of x. weight has shape (x.shape[-1],)."""
    orig_shape = x.shape
    D = orig_shape[-1]
    assert weight.shape == (D,), "weight must have shape (hidden,)"
    R = 1
    for s in orig_shape[:-1]:
        R *= s
    x2d = x.reshape(R, D)          # free: contiguous reshape, no HBM copy
    w2d = weight.reshape(1, D)

    out_dtype = jnp.promote_types(x.dtype, weight.dtype)
    in_bytes = jnp.dtype(x.dtype).itemsize
    out_bytes = jnp.dtype(out_dtype).itemsize
    w_bytes = jnp.dtype(weight.dtype).itemsize
    packing = _sublane_packing(x.dtype)

    if tile_rows is None:
        # Fixed absolute tile target (independent of chip VMEM capacity).
        tile_rows = (_TILE_BYTES_TARGET // max(D * in_bytes, 1)) // packing * packing
        tile_rows = max(packing, tile_rows)
        # Never tile far past the actual row count.
        tile_rows = min(tile_rows, _round_up(R, packing))
        # v7x only: keep >= 2 grid steps per TensorCore so each core can
        # double-buffer; the 'parallel' axis is sharded across the 2 TCs.
        if _is_multi_tc_chip() and R >= 4 * packing:
            tile_rows = min(tile_rows, max(packing, (R // 4) // packing * packing))
    else:
        tile_rows = max(packing, _round_up(tile_rows, packing))

    grid_steps = pl.cdiv(R, tile_rows)   # ragged last block handled by Pallas

    # Scoped VMEM sized once from the tiles (double-buffered in/out + f32
    # temporaries), capped well under v7x's 64 MiB per-TC physical VMEM.
    est = (2 * tile_rows * D * in_bytes      # double-buffered input
           + 2 * tile_rows * D * out_bytes   # double-buffered output
           + 2 * D * w_bytes                 # resident weight block
           + 3 * tile_rows * D * 4)          # in-kernel f32 intermediates
    vmem_limit = int(min(48 * 1024 * 1024,
                         max(est * 3 // 2, 16 * 1024 * 1024)))

    out = pl.pallas_call(
        functools.partial(_rmsnorm_kernel, eps=float(eps)),
        out_shape=jax.ShapeDtypeStruct((R, D), out_dtype),
        grid_spec=pltpu.PrefetchScalarGridSpec(
            num_scalar_prefetch=0,
            grid=(grid_steps,),
            in_specs=[
                pl.BlockSpec((tile_rows, D), lambda i: (i, 0)),
                pl.BlockSpec((1, D), lambda i: (0, 0)),   # weight stays resident
            ],
            out_specs=pl.BlockSpec((tile_rows, D), lambda i: (i, 0)),
        ),
        compiler_params=pltpu.CompilerParams(
            dimension_semantics=("parallel",),
            vmem_limit_bytes=vmem_limit,
        ),
    )(x2d, w2d)

    return out.reshape(orig_shape[:-1] + (D,))


def _reference(x, weight, eps):
    xf = x.astype(jnp.float32)
    normed = (xf * jax.lax.rsqrt(jnp.mean(xf * xf, axis=-1, keepdims=True) + eps)
              ).astype(x.dtype)
    out_dtype = jnp.promote_types(x.dtype, weight.dtype)
    return normed.astype(out_dtype) * weight.astype(out_dtype)


if __name__ == "__main__":
    key = jax.random.PRNGKey(0)

    # Main case (matches the module's intended use): batch=2, seq=8, hidden=32.
    batch, seq, hidden = 2, 8, 32
    x = jax.random.normal(key, (batch, seq, hidden), dtype=jnp.float32)
    weight = jnp.ones((hidden,), dtype=jnp.float32)   # RMSNorm init: ones
    eps = 1e-5

    y = rmsnorm(x, weight, eps)
    jax.block_until_ready(y)
    ref = _reference(x, weight, eps)
    assert y.shape == x.shape and y.dtype == jnp.promote_types(x.dtype, weight.dtype)
    assert jnp.allclose(y, ref, atol=1e-5, rtol=1e-5), "mismatch vs reference"

    # Ragged-row case (R not a multiple of the tile) with a non-trivial weight:
    # exercises the no-pad / no-slice path.
    k1, k2 = jax.random.split(key)
    x2 = jax.random.normal(k1, (3, 5, 160), dtype=jnp.float32)
    w2 = 1.0 + 0.1 * jax.random.normal(k2, (160,), dtype=jnp.float32)
    y2 = rmsnorm(x2, w2, eps)
    jax.block_until_ready(y2)
    ref2 = _reference(x2, w2, eps)
    assert y2.shape == x2.shape
    assert jnp.allclose(y2, ref2, atol=1e-5, rtol=1e-5), "mismatch vs reference (ragged)"

    print("KERNEL_OK")
</pallas_src>

<mosaic_0001>
module attributes {stable_mosaic.version = 11 : i64} {
  func.func @_rmsnorm_kernel(%arg0: i32, %arg1: memref<16x32xf32, #tpu.memory_space<vmem>>, %arg2: memref<1x32xf32, #tpu.memory_space<vmem>>, %arg3: memref<16x32xf32, #tpu.memory_space<vmem>>) attributes {dimension_semantics = [#tpu.dimension_semantics<parallel>], iteration_bounds = array<i64: 1>, scalar_prefetch = 0 : i64, scratch_operands = 0 : i64, tpu.core_type = #tpu.core_type<tc>, window_params = [{transform_indices = @transform_0, window_bounds = array<i64: 16, 32>}, {pipeline_mode = #tpu.pipeline_mode<synchronous>, transform_indices = @transform_1, window_bounds = array<i64: 1, 32>}, {transform_indices = @transform_2, window_bounds = array<i64: 16, 32>}]} {
    %c0 = arith.constant 0 : index
    %c0_0 = arith.constant 0 : index
    %0 = vector.load %arg1[%c0, %c0_0] : memref<16x32xf32, #tpu.memory_space<vmem>>, vector<16x32xf32>
    %1 = arith.mulf %0, %0 : vector<16x32xf32>
    %cst = arith.constant dense<0.000000e+00> : vector<16xf32>
    %2 = vector.multi_reduction <add>, %1, %cst [1] : vector<16x32xf32> to vector<16xf32>
    %3 = vector.shape_cast %2 : vector<16xf32> to vector<16x1xf32>
    %cst_1 = arith.constant 3.200000e+01 : f32
    %4 = vector.broadcast %cst_1 : f32 to vector<16x1xf32>
    %5 = arith.divf %3, %4 : vector<16x1xf32>
    %cst_2 = arith.constant 9.99999974E-6 : f32
    %6 = vector.broadcast %cst_2 : f32 to vector<16x1xf32>
    %7 = arith.addf %5, %6 : vector<16x1xf32>
    %8 = math.rsqrt %7 : vector<16x1xf32>
    %9 = vector.broadcast %8 : vector<16x1xf32> to vector<16x32xf32>
    %10 = arith.mulf %0, %9 : vector<16x32xf32>
    %c0_3 = arith.constant 0 : index
    %c0_4 = arith.constant 0 : index
    %11 = vector.load %arg2[%c0_3, %c0_4] : memref<1x32xf32, #tpu.memory_space<vmem>>, vector<1x32xf32>
    %12 = vector.broadcast %11 : vector<1x32xf32> to vector<16x32xf32>
    %13 = arith.mulf %10, %12 : vector<16x32xf32>
    %c0_5 = arith.constant 0 : index
    %c0_6 = arith.constant 0 : index
    %14 = vector.load %arg3[%c0_5, %c0_6] : memref<16x32xf32, #tpu.memory_space<vmem>>, vector<16x32xf32>
    tpu.vector_store %arg3[%c0_5, %c0_6], %13 {strides = array<i32>} : memref<16x32xf32, #tpu.memory_space<vmem>>, vector<16x32xf32>,
    return
  }
  func.func @transform_0(%arg0: i32) -> (i32, i32) {
    %c0_i32 = arith.constant 0 : i32
    %c0_i32_0 = arith.constant 0 : i32
    return %arg0, %c0_i32 : i32, i32
  }
  func.func @transform_1(%arg0: i32) -> (i32, i32) {
    %c0_i32 = arith.constant 0 : i32
    %c0_i32_0 = arith.constant 0 : i32
    %c0_i32_1 = arith.constant 0 : i32
    return %c0_i32, %c0_i32_0 : i32, i32
  }
  func.func @transform_2(%arg0: i32) -> (i32, i32) {
    %c0_i32 = arith.constant 0 : i32
    %c0_i32_0 = arith.constant 0 : i32
    return %arg0, %c0_i32 : i32, i32
  }
}

</mosaic_0001>

<llo_original>
// kernel: tpu_custom_call.1
$region0: #{tpu_custom_call.1}
  #allocation0 [shape = 'u32[]', space=smem, size = 0x4, offset = 0x4, fixed_abs, tag = 'smem constant byte address 0x4 - core index']
  #allocation1 [shape = 'u32[144,128]{1,0:T(1,128)}', space=vmem, size = 0x12000, scoped, tag = 'internal scratch']
  %s0 = inlined_call_operand.hbm [shape: f32[16,32], index: 0, kind: input, shape index: {}]
  %s1 = inlined_call_operand.vmem [shape: f32[1,32], index: 1, kind: input, shape index: {}]
  %s2 = inlined_call_operand.hbm [shape: f32[16,32], index: 2, kind: output, shape index: {}]
  %s3 = sld [smem:[#allocation0]]
  $region22: #{tpu_custom_call.1} parent=0
    _
  %s5 = ssub.s32 1, %s3
  %s6 = scalar_select 0, %s5, %s3
  $region1: #{tpu_custom_call.1} parent=0
    #allocation2 [shape = 'u8[8192]{0}', space=vmem, size = 0x2000, scoped, tag = 'input window, operand 0, single buffered']
    #allocation3 [shape = 's32[1]{0}', space=sflag, size = 0x4, scoped, tag = 'scoped memory for tpu_custom_call.1']
    #allocation4 [shape = 's32[1]{0}', space=sflag, size = 0x4, scoped, tag = 'scoped memory for tpu_custom_call.1']
    #allocation5 [shape = 'u8[8192]{0}', space=vmem, size = 0x2000, scoped, tag = 'output window, operand 0, single buffered']
    %7 = vsyncpa [#allocation3], 0
    %8 = vsyncpa [#allocation4], 0
    // Predicated region
    $region2: #{tpu_custom_call.1} parent=1 // pred_check
      _
    $region3: #{tpu_custom_call.1} parent=1 // pred_check_branch
      %10 = sbr.rel (0) target = $region5
    $region4: #{tpu_custom_call.1} parent=1 // pred_region
      %s12 = ssub.s32 256, 256
      %13 = vsyncadd [#allocation3], %s12
      %s14 = sshll.u32 [#allocation2], 4
      %s15 = int_to_ptr.vmem [resolvable:$true] %s14
      %20 = dma.hbm_to_vmem [thread:$0]  %s0, 256, %s15, [#allocation3], 128, 128, 8
    $region5: #{tpu_custom_call.1} parent=1 // pred_fallthru
      _
    // Predicated region
    $region6: #{tpu_custom_call.1} parent=1 // pred_check
      _
    $region7: #{tpu_custom_call.1} parent=1 // pred_check_branch
      %22 = sbr.rel (0) target = $region9
    $region8: #{tpu_custom_call.1} parent=1 // pred_region
      _
    $region9: #{tpu_custom_call.1} parent=1 // pred_fallthru
      _
    // Predicated region
    $region10: #{tpu_custom_call.1} parent=1 // pred_check
      _
    $region11: #{tpu_custom_call.1} parent=1 // pred_check_branch
      %24 = sbr.rel (0) target = $region13
    $region12: #{tpu_custom_call.1} parent=1 // pred_region
      %25 = dma.done [#allocation3], 256
    $region13: #{tpu_custom_call.1} parent=1 // pred_fallthru
      _
    %v26 = vld [vmem:[#allocation2] sm:$0xff]
    %v27 = vld [vmem:[#allocation2 + $0x8] sm:$0xff]
    %v28 = vmul.f32 %v26, %v26
    %v29 = vmul.f32 %v27, %v27
    %vm30 = vcmask 261120
    %v31 = vsel %vm30, %v28, 0.0
    %32 = vadd.xlane.f32.xlu0 %v31
    %v33 = vpop.xlane.xlu0 %32
    %v34 = vsel %vm30, %v29, 0.0
    %35 = vadd.xlane.f32.xlu0 %v34
    %v36 = vpop.xlane.xlu0 %35
    %v37 = vrcp.pop 32.0
    %v38 = vmul.f32 %v33, %v37
    %v39 = vmul.f32 %v36, %v37
    %v40 = vadd.f32 %v38, 1e-05
    %v41 = vadd.f32 %v39, 1e-05
    %v42 = vrsqrt.pop %v40
    %v43 = vrsqrt.pop %v41
    %v44 = vmul.f32 %v26, %v42
    %v45 = vmul.f32 %v27, %v43
    %v46 = vld [vmem:[%s1] sm:$0x1]
    %v48 = vlaneseq
    %v49 = vshrl.u32 %v48, 7
    %v50 = vsub.s32 0, %v49
    %v51 = vrot.slane %v46, %v50
    %v53 = vmul.f32 %v44, %v51
    %v54 = vmul.f32 %v45, %v51
    %55 = vst.msk [vmem:[#allocation5] sm:$0xff] %vm30, %v53
    %56 = vst.msk [vmem:[#allocation5 + $0x8] sm:$0xff] %vm30, %v54
    // Predicated region
    $region14: #{tpu_custom_call.1} parent=1 // pred_check
      _
    $region15: #{tpu_custom_call.1} parent=1 // pred_check_branch
      %58 = sbr.rel (0) target = $region17
    $region16: #{tpu_custom_call.1} parent=1 // pred_region
      %s60 = ssub.s32 256, 256
      %61 = vsyncadd [#allocation4], %s60
      %s62 = sshll.u32 [#allocation5], 4
      %s63 = int_to_ptr.vmem [resolvable:$true] %s62
      %68 = dma.vmem_to_hbm [thread:$0]  %s63, 256, %s2, [#allocation4], 128, 128, 8
    $region17: #{tpu_custom_call.1} parent=1 // pred_fallthru
      _
    // Predicated region
    $region18: #{tpu_custom_call.1} parent=1 // pred_check
      _
    $region19: #{tpu_custom_call.1} parent=1 // pred_check_branch
      %70 = sbr.rel (0) target = $region21
    $region20: #{tpu_custom_call.1} parent=1 // pred_region
      %71 = dma.done [#allocation4], 256
    $region21: #{tpu_custom_call.1} parent=1 // pred_fallthru
      _
    %72 = vsyncpa [#allocation3], 1
    %73 = vsyncpa [#allocation4], 1

</llo_original>
